<compile_context>
chip_gen: v7x
topology: tpu7x:2x2x1
jax: 0.10.0
libtpu: 0.0.40
codegen_flags: <defaults>
</compile_context>

<pallas_src>
import math
from functools import partial

import jax
import jax.numpy as jnp
from jax import lax
from jax.experimental import pallas as pl
from jax.experimental.pallas import tpu as pltpu

# SplitMix32-style finalizer constants (int32 two's-complement encodings).
_C1 = 0x7FEB352D           #  2146121005
_C2 = -2073385333          #  0x846CA68B reinterpreted as int32
_GOLDEN = -1640531527      #  0x9E3779B9 reinterpreted as int32


def _mix32(v):
    """SplitMix32-style avalanche on int32 values (mul wraps mod 2**32)."""
    v = v ^ lax.shift_right_logical(v, 16)
    v = v * _C1
    v = v ^ lax.shift_right_logical(v, 15)
    v = v * _C2
    v = v ^ lax.shift_right_logical(v, 16)
    return v


def _gaussian_dropout_kernel(seed_ref, x_ref, o_ref, *, std, tile_rows, lane):
    i = pl.program_id(0)
    seed_m = _mix32(seed_ref[0])               # scalar-unit work only
    lane_shift = int(lane).bit_length() - 1    # lane is a power of two
    inv16 = 1.0 / 65536.0
    two_pi = 2.0 * math.pi

    def r_theta(pid):
        # One hash per Box-Muller pair; golden-ratio pre-multiply fixes the
        # weak low-bit avalanche of a raw sequential counter.
        k = _mix32((pid * _GOLDEN) ^ seed_m)
        u1 = (lax.shift_right_logical(k, 16).astype(jnp.float32) + 1.0) * inv16  # (0, 1]
        u2 = jnp.bitwise_and(k, 0xFFFF).astype(jnp.float32) * inv16              # [0, 1)
        r = jnp.sqrt(-2.0 * jnp.log(u1))
        return r, two_pi * u2

    if tile_rows % 16 == 0:
        # Paired Box-Muller: one hash + log + sqrt amortized over TWO normals
        # (cos -> top half rows, sin -> bottom half rows of the tile).
        half = tile_rows // 2
        hshape = (half, lane)
        row = lax.broadcasted_iota(jnp.int32, hshape, 0) + i * half
        col = lax.broadcasted_iota(jnp.int32, hshape, 1)
        pid = jnp.left_shift(row, lane_shift) | col        # row*lane + col
        r, th = r_theta(pid)
        o_ref[:half, :] = (x_ref[:half, :].astype(jnp.float32)
                           * (r * jnp.cos(th) * std + 1.0)).astype(o_ref.dtype)
        o_ref[half:, :] = (x_ref[half:, :].astype(jnp.float32)
                           * (r * jnp.sin(th) * std + 1.0)).astype(o_ref.dtype)
    else:
        # Tiny-input fallback (tile_rows == 8): one normal per element.
        shape = (tile_rows, lane)
        row = lax.broadcasted_iota(jnp.int32, shape, 0) + i * tile_rows
        col = lax.broadcasted_iota(jnp.int32, shape, 1)
        pid = jnp.left_shift(row, lane_shift) | col
        r, th = r_theta(pid)
        o_ref[...] = (x_ref[...].astype(jnp.float32)
                      * (r * jnp.cos(th) * std + 1.0)).astype(o_ref.dtype)


def gaussian_dropout(x, seed, drop_rate, training=True):
    """JAX/Pallas equivalent of GaussianDropout.forward."""
    if (not training) or drop_rate <= 0.0:
        return x                                           # eval mode: identity

    std = math.sqrt(drop_rate / (1.0 - drop_rate))
    orig_shape, orig_dtype = x.shape, x.dtype
    n = x.size
    itemsize = jnp.dtype(orig_dtype).itemsize

    # Lane-dense slab [rows, lane]: prefer rows % 16 == 0 (paired Box-Muller
    # path applies to every tile), then rows % 8 == 0; widest lane first.
    lane = None
    for mult in (16, 8):
        for cand in (1024, 512, 256, 128):
            if n % (mult * cand) == 0:
                lane = cand
                break
        if lane is not None:
            break

    flat = x.reshape(-1)
    pad = 0
    if lane is None:
        # TODO(synk): replace pad + post-slice with an in-kernel masked tail
        # store (pltpu.store(..., mask=)) to avoid two extra HBM passes.
        lane = 128
        pad = (-n) % (8 * lane)
        flat = jnp.pad(flat, (0, pad))

    rows = flat.shape[0] // lane
    x2d = flat.reshape(rows, lane)

    # ~2 MiB f32 blocks, rows a multiple of 16 (paired path); Pallas
    # double-buffers the HBM<->VMEM DMA against compute.
    SUB = 16
    target_rows = max(SUB, ((2 << 20) // (lane * 4)) // SUB * SUB)
    # Keep >= 4 grid steps when the input allows it: enables the v7x 2-TC
    # "parallel" split and DMA/compute pipelining for medium inputs.
    MIN_STEPS = 4
    cap = ((rows // MIN_STEPS) // SUB) * SUB
    if cap >= SUB:
        target_rows = min(target_rows, cap)
    tr = min(rows, target_rows)
    grid = (pl.cdiv(rows, tr),)

    # Double-buffered (in + out) working set plus slack; fits every generation.
    tile_bytes = tr * lane * itemsize
    vmem_limit = int(min(64 * 1024 * 1024,
                         max(16 * 1024 * 1024, 4 * tile_bytes + (4 << 20))))

    seed_arr = jnp.asarray([seed], dtype=jnp.int32)

    out2d = pl.pallas_call(
        partial(_gaussian_dropout_kernel, std=std, tile_rows=tr, lane=lane),
        out_shape=jax.ShapeDtypeStruct((rows, lane), orig_dtype),
        grid=grid,
        in_specs=[
            pl.BlockSpec(memory_space=pltpu.MemorySpace.SMEM),   # seed scalar
            pl.BlockSpec((tr, lane), lambda i: (i, 0)),          # x tile
        ],
        out_specs=pl.BlockSpec((tr, lane), lambda i: (i, 0)),
        compiler_params=pltpu.CompilerParams(
            dimension_semantics=("parallel",),                   # v7x 2-TC split
            vmem_limit_bytes=vmem_limit),
        cost_estimate=pl.CostEstimate(
            flops=32 * n,                     # hash + Box-Muller arithmetic
            transcendentals=2 * n,            # (log+sqrt+cos+sin) per pair
            bytes_accessed=2 * n * itemsize),
    )(seed_arr, x2d)

    out_flat = out2d.reshape(-1)
    if pad:
        out_flat = out_flat[:n]
    return out_flat.reshape(orig_shape)


if __name__ == "__main__":
    key = jax.random.PRNGKey(0)
    # Small NCHW feature map consistent with the module's typical use.
    x = jax.random.normal(key, (2, 4, 16, 16), dtype=jnp.float32)
    drop_rate = 0.3

    out_train = jax.block_until_ready(
        gaussian_dropout(x, seed=42, drop_rate=drop_rate, training=True))
    out_eval = jax.block_until_ready(
        gaussian_dropout(x, seed=42, drop_rate=drop_rate, training=False))

    # Shape / dtype preserved; eval path is an exact identity.
    assert out_train.shape == x.shape and out_train.dtype == x.dtype
    assert bool(jnp.all(out_eval == x))

    # Training output = x * (noise*std + 1): multiplier centered at 1 with
    # nonzero spread (std of the gain ~ sqrt(p/(1-p)) ~ 0.65).
    mask = jnp.abs(x) > 1e-3
    ratio = jnp.where(mask, out_train / jnp.where(mask, x, 1.0), 1.0)
    cnt = jnp.sum(mask)
    mean_ratio = jnp.sum(jnp.where(mask, ratio, 0.0)) / cnt
    var_ratio = jnp.sum(jnp.where(mask, (ratio - mean_ratio) ** 2, 0.0)) / cnt
    assert abs(float(mean_ratio) - 1.0) < 0.25
    assert 0.1 < float(jnp.sqrt(var_ratio)) < 1.5

    # Awkward size exercises the pad fallback + unpaired kernel branch.
    x_odd = jax.random.normal(jax.random.PRNGKey(1), (3, 7, 11), jnp.float32)
    out_odd = jax.block_until_ready(
        gaussian_dropout(x_odd, seed=7, drop_rate=drop_rate, training=True))
    assert out_odd.shape == x_odd.shape
    assert bool(jnp.all(jnp.isfinite(out_odd)))
    assert not bool(jnp.all(out_odd == x_odd))

    print("KERNEL_OK")
</pallas_src>

<mosaic_0001>
module attributes {stable_mosaic.version = 11 : i64} {
  func.func @_gaussian_dropout_kernel(%arg0: i32, %arg1: memref<1xi32, #tpu.memory_space<smem>>, %arg2: memref<16x128xf32, #tpu.memory_space<vmem>>, %arg3: memref<16x128xf32, #tpu.memory_space<vmem>>) attributes {dimension_semantics = [#tpu.dimension_semantics<parallel>], iteration_bounds = array<i64: 1>, scalar_prefetch = 0 : i64, scratch_operands = 0 : i64, tpu.core_type = #tpu.core_type<tc>, window_params = [{transform_indices = @transform_0, window_bounds = array<i64: 1>}, {transform_indices = @transform_1, window_bounds = array<i64: 16, 128>}, {transform_indices = @transform_2, window_bounds = array<i64: 16, 128>}]} {
    %c0 = arith.constant 0 : index
    %0 = memref.load %arg1[%c0] : memref<1xi32, #tpu.memory_space<smem>>
    %c16_i32 = arith.constant 16 : i32
    %1 = arith.shrui %0, %c16_i32 : i32
    %2 = arith.xori %0, %1 : i32
    %c2146121005_i32 = arith.constant 2146121005 : i32
    %3 = arith.muli %2, %c2146121005_i32 : i32
    %c15_i32 = arith.constant 15 : i32
    %4 = arith.shrui %3, %c15_i32 : i32
    %5 = arith.xori %3, %4 : i32
    %c-2073385333_i32 = arith.constant -2073385333 : i32
    %6 = arith.muli %5, %c-2073385333_i32 : i32
    %c16_i32_0 = arith.constant 16 : i32
    %7 = arith.shrui %6, %c16_i32_0 : i32
    %8 = arith.xori %6, %7 : i32
    %9 = tpu.iota {dimensions = array<i32: 0>} : vector<8x128xi32>
    %c8_i32 = arith.constant 8 : i32
    %10 = arith.muli %arg0, %c8_i32 : i32
    %11 = vector.broadcast %10 : i32 to vector<8x128xi32>
    %12 = arith.addi %9, %11 : vector<8x128xi32>
    %13 = tpu.iota {dimensions = array<i32: 1>} : vector<8x128xi32>
    %c7_i32 = arith.constant 7 : i32
    %14 = vector.broadcast %c7_i32 : i32 to vector<8x128xi32>
    %15 = arith.shli %12, %14 : vector<8x128xi32>
    %16 = arith.ori %15, %13 : vector<8x128xi32>
    %c-1640531527_i32 = arith.constant -1640531527 : i32
    %17 = vector.broadcast %c-1640531527_i32 : i32 to vector<8x128xi32>
    %18 = arith.muli %16, %17 : vector<8x128xi32>
    %19 = vector.broadcast %8 : i32 to vector<8x128xi32>
    %20 = arith.xori %18, %19 : vector<8x128xi32>
    %c16_i32_1 = arith.constant 16 : i32
    %21 = vector.broadcast %c16_i32_1 : i32 to vector<8x128xi32>
    %22 = arith.shrui %20, %21 : vector<8x128xi32>
    %23 = arith.xori %20, %22 : vector<8x128xi32>
    %c2146121005_i32_2 = arith.constant 2146121005 : i32
    %24 = vector.broadcast %c2146121005_i32_2 : i32 to vector<8x128xi32>
    %25 = arith.muli %23, %24 : vector<8x128xi32>
    %c15_i32_3 = arith.constant 15 : i32
    %26 = vector.broadcast %c15_i32_3 : i32 to vector<8x128xi32>
    %27 = arith.shrui %25, %26 : vector<8x128xi32>
    %28 = arith.xori %25, %27 : vector<8x128xi32>
    %c-2073385333_i32_4 = arith.constant -2073385333 : i32
    %29 = vector.broadcast %c-2073385333_i32_4 : i32 to vector<8x128xi32>
    %30 = arith.muli %28, %29 : vector<8x128xi32>
    %c16_i32_5 = arith.constant 16 : i32
    %31 = vector.broadcast %c16_i32_5 : i32 to vector<8x128xi32>
    %32 = arith.shrui %30, %31 : vector<8x128xi32>
    %33 = arith.xori %30, %32 : vector<8x128xi32>
    %c16_i32_6 = arith.constant 16 : i32
    %34 = vector.broadcast %c16_i32_6 : i32 to vector<8x128xi32>
    %35 = arith.shrui %33, %34 : vector<8x128xi32>
    %36 = arith.sitofp %35 : vector<8x128xi32> to vector<8x128xf32>
    %cst = arith.constant 1.000000e+00 : f32
    %37 = vector.broadcast %cst : f32 to vector<8x128xf32>
    %38 = arith.addf %36, %37 : vector<8x128xf32>
    %cst_7 = arith.constant 1.52587891E-5 : f32
    %39 = vector.broadcast %cst_7 : f32 to vector<8x128xf32>
    %40 = arith.mulf %38, %39 : vector<8x128xf32>
    %c65535_i32 = arith.constant 65535 : i32
    %41 = vector.broadcast %c65535_i32 : i32 to vector<8x128xi32>
    %42 = arith.andi %33, %41 : vector<8x128xi32>
    %43 = arith.sitofp %42 : vector<8x128xi32> to vector<8x128xf32>
    %cst_8 = arith.constant 1.52587891E-5 : f32
    %44 = vector.broadcast %cst_8 : f32 to vector<8x128xf32>
    %45 = arith.mulf %43, %44 : vector<8x128xf32>
    %46 = math.log %40 : vector<8x128xf32>
    %cst_9 = arith.constant -2.000000e+00 : f32
    %47 = vector.broadcast %cst_9 : f32 to vector<8x128xf32>
    %48 = arith.mulf %47, %46 : vector<8x128xf32>
    %49 = math.sqrt %48 : vector<8x128xf32>
    %cst_10 = arith.constant 6.28318548 : f32
    %50 = vector.broadcast %cst_10 : f32 to vector<8x128xf32>
    %51 = arith.mulf %50, %45 : vector<8x128xf32>
    %c0_11 = arith.constant 0 : index
    %c0_12 = arith.constant 0 : index
    %52 = vector.load %arg2[%c0_11, %c0_12] : memref<16x128xf32, #tpu.memory_space<vmem>>, vector<8x128xf32>
    %53 = math.cos %51 : vector<8x128xf32>
    %54 = arith.mulf %49, %53 : vector<8x128xf32>
    %cst_13 = arith.constant 0.654653668 : f32
    %55 = vector.broadcast %cst_13 : f32 to vector<8x128xf32>
    %56 = arith.mulf %54, %55 : vector<8x128xf32>
    %cst_14 = arith.constant 1.000000e+00 : f32
    %57 = vector.broadcast %cst_14 : f32 to vector<8x128xf32>
    %58 = arith.addf %56, %57 : vector<8x128xf32>
    %59 = arith.mulf %52, %58 : vector<8x128xf32>
    %c0_15 = arith.constant 0 : index
    %c0_16 = arith.constant 0 : index
    %60 = vector.load %arg3[%c0_15, %c0_16] : memref<16x128xf32, #tpu.memory_space<vmem>>, vector<8x128xf32>
    tpu.vector_store %arg3[%c0_15, %c0_16], %59 {strides = array<i32>} : memref<16x128xf32, #tpu.memory_space<vmem>>, vector<8x128xf32>,
    %c8 = arith.constant 8 : index
    %c0_17 = arith.constant 0 : index
    %61 = vector.load %arg2[%c8, %c0_17] : memref<16x128xf32, #tpu.memory_space<vmem>>, vector<8x128xf32>
    %62 = math.sin %51 : vector<8x128xf32>
    %63 = arith.mulf %49, %62 : vector<8x128xf32>
    %cst_18 = arith.constant 0.654653668 : f32
    %64 = vector.broadcast %cst_18 : f32 to vector<8x128xf32>
    %65 = arith.mulf %63, %64 : vector<8x128xf32>
    %cst_19 = arith.constant 1.000000e+00 : f32
    %66 = vector.broadcast %cst_19 : f32 to vector<8x128xf32>
    %67 = arith.addf %65, %66 : vector<8x128xf32>
    %68 = arith.mulf %61, %67 : vector<8x128xf32>
    %c8_20 = arith.constant 8 : index
    %c0_21 = arith.constant 0 : index
    %69 = vector.load %arg3[%c8_20, %c0_21] : memref<16x128xf32, #tpu.memory_space<vmem>>, vector<8x128xf32>
    tpu.vector_store %arg3[%c8_20, %c0_21], %68 {strides = array<i32>} : memref<16x128xf32, #tpu.memory_space<vmem>>, vector<8x128xf32>,
    return
  }
  func.func @transform_0(%arg0: i32) -> i32 {
    %c0_i32 = arith.constant 0 : i32
    %c0_i32_0 = arith.constant 0 : i32
    return %c0_i32 : i32
  }
  func.func @transform_1(%arg0: i32) -> (i32, i32) {
    %c0_i32 = arith.constant 0 : i32
    %c0_i32_0 = arith.constant 0 : i32
    return %arg0, %c0_i32 : i32, i32
  }
  func.func @transform_2(%arg0: i32) -> (i32, i32) {
    %c0_i32 = arith.constant 0 : i32
    %c0_i32_0 = arith.constant 0 : i32
    return %arg0, %c0_i32 : i32, i32
  }
}

</mosaic_0001>

<llo_original>
// kernel: tpu_custom_call.1
$region0: #{tpu_custom_call.1}
  #allocation0 [shape = 'u32[]', space=smem, size = 0x4, offset = 0x4, fixed_abs, tag = 'smem constant byte address 0x4 - core index']
  #allocation1 [shape = 'u32[144,128]{1,0:T(1,128)}', space=vmem, size = 0x12000, scoped, tag = 'internal scratch']
  #allocation2 [shape = 's32[1]{0:T(128)S(6)}', space=smem, size = 0x200, scoped, tag = 'scoped memory for tpu_custom_call.1']
  %s0 = inlined_call_operand.<no memory space> [shape: s32[1], index: 0, kind: input, shape index: {}]
  %s1 = inlined_call_operand.hbm [shape: f32[16,128], index: 1, kind: input, shape index: {}]
  %s2 = inlined_call_operand.hbm [shape: f32[16,128], index: 2, kind: output, shape index: {}]
  %s3 = sld [smem:[#allocation0]]
  $region22: #{tpu_custom_call.1} parent=0
    _
  %s5 = ssub.s32 1, %s3
  %s6 = scalar_select 0, %s5, %s3
  %7 = sst [smem:[#allocation2]] %s0
  $region1: #{tpu_custom_call.1} parent=0
    #allocation3 [shape = 'u8[8192]{0}', space=vmem, size = 0x2000, scoped, tag = 'input window, operand 1, single buffered']
    #allocation4 [shape = 's32[1]{0}', space=sflag, size = 0x4, scoped, tag = 'scoped memory for tpu_custom_call.1']
    #allocation5 [shape = 's32[1]{0}', space=sflag, size = 0x4, scoped, tag = 'scoped memory for tpu_custom_call.1']
    #allocation6 [shape = 'u8[8192]{0}', space=vmem, size = 0x2000, scoped, tag = 'output window, operand 0, single buffered']
    %8 = vsyncpa [#allocation4], 0
    %9 = vsyncpa [#allocation5], 0
    // Predicated region
    $region2: #{tpu_custom_call.1} parent=1 // pred_check
      _
    $region3: #{tpu_custom_call.1} parent=1 // pred_check_branch
      %11 = sbr.rel (0) target = $region5
    $region4: #{tpu_custom_call.1} parent=1 // pred_region
      _
    $region5: #{tpu_custom_call.1} parent=1 // pred_fallthru
      _
    // Predicated region
    $region6: #{tpu_custom_call.1} parent=1 // pred_check
      _
    $region7: #{tpu_custom_call.1} parent=1 // pred_check_branch
      %13 = sbr.rel (0) target = $region9
    $region8: #{tpu_custom_call.1} parent=1 // pred_region
      %s15 = ssub.s32 256, 256
      %16 = vsyncadd [#allocation4], %s15
      %s17 = sshll.u32 [#allocation3], 4
      %s18 = int_to_ptr.vmem [resolvable:$true] %s17
      %23 = dma.hbm_to_vmem [thread:$0]  %s1, 256, %s18, [#allocation4], 128, 128, 8
    $region9: #{tpu_custom_call.1} parent=1 // pred_fallthru
      _
    // Predicated region
    $region10: #{tpu_custom_call.1} parent=1 // pred_check
      _
    $region11: #{tpu_custom_call.1} parent=1 // pred_check_branch
      %25 = sbr.rel (0) target = $region13
    $region12: #{tpu_custom_call.1} parent=1 // pred_region
      %26 = dma.done [#allocation4], 256
    $region13: #{tpu_custom_call.1} parent=1 // pred_fallthru
      _
    %s27 = sld [smem:[#allocation2]]
    %s28 = sshrl.u32 %s27, 16
    %s29 = sxor.u32 %s27, %s28
    %s30 = smul.u32 %s29, 2146121005
    %s31 = sshrl.u32 %s30, 15
    %s32 = sxor.u32 %s30, %s31
    %s33 = smul.u32 %s32, 2221581963
    %s34 = sshrl.u32 %s33, 16
    %s35 = sxor.u32 %s33, %s34
    %v36 = vlaneseq
    %v37 = vshrl.u32 %v36, 7
    %s38 = smul.u32 0, 8
    %v39 = vstv %s38
    %v40 = vadd.s32 %v37, %v39
    %v41 = vlaneseq
    %v42 = vand.u32 %v41, 127
    %v43 = vshll.u32 %v40, 7
    %v44 = vor.u32 %v43, %v42
    %v45 = vmul.u32 %v44, 2654435769
    %v46 = vstv %s35
    %v47 = vxor.u32 %v45, %v46
    %v48 = vshrl.u32 %v47, 16
    %v49 = vxor.u32 %v47, %v48
    %v50 = vmul.u32 %v49, 2146121005
    %v51 = vshrl.u32 %v50, 15
    %v52 = vxor.u32 %v50, %v51
    %v53 = vmul.u32 %v52, 2221581963
    %v54 = vshrl.u32 %v53, 16
    %v55 = vxor.u32 %v53, %v54
    %v56 = vshrl.u32 %v55, 16
    %v57 = vcvt.s32.f32 %v56
    %v58 = vadd.f32 %v57, 1.0
    %v59 = vmul.f32 %v58, 1.5258789e-05
    %v60 = vand.u32 %v55, 65535
    %v61 = vcvt.s32.f32 %v60
    %v62 = vmul.f32 %v61, 1.5258789e-05
    %v63 = vlog2.pop %v59
    %v64 = vmul.f32 %v63, 0.6931472
    %v65 = vmul.f32 %v64, -2.0
    %v66 = vrsqrt.pop %v65
    %v67 = vmul.f32 %v65, %v66
    %vm68 = vcmp.eq.f32.partialorder %v65, inf
    %v69 = vsel %vm68, %v65, %v67
    %vm70 = vcmp.eq.f32.partialorder %v65, 0.0
    %v71 = vand.u32 %v65, 2147483648
    %v72 = vsel %vm70, %v71, %v69
    %v73 = vmul.f32 %v62, 6.2831855
    %v74 = vld [vmem:[#allocation3] sm:$0xff]
    %v75 = vand.u32 2147483647, %v73
    %vm76 = vcmp.le.f32.partialorder %v75, 0.7853982
    %vm77 = vcmp.lt.s32.totalorder %v73, 0
    %v78 = vand.u32 %v73, 2139095040
    %v79 = vshrl.u32 %v78, 23
    %v80 = vsub.s32 %v79, 127
    %v81 = vand.u32 2147483647, %v73
    %v82 = vand.u32 %v81, 8388607
    %v83 = vor.u32 %v82, 8388608
    %v84 = vsub.s32 0, %v83
    %v85 = vadd.s32 %v80, 1
    %vm86 = vcmp.gt.s32.totalorder %v85, 0
    %v87 = vsel %vm86, %v85, 0
    %v88 = vshrl.u32 %v87, 5
    %v89 = vand.u32 %v87, 31
    %v90 = vsub.s32 32, %v89
    %v91 = vshrl.u32 683565275, %v90
    %v92 = vshll.u32 683565275, %v89
    %v93 = vshrl.u32 2475754826, %v90
    %v94 = vor.u32 %v92, %v93
    %v95 = vshll.u32 2475754826, %v89
    %v96 = vshrl.u32 2131351028, %v90
    %v97 = vor.u32 %v95, %v96
    %v98 = vshll.u32 2131351028, %v89
    %v99 = vshrl.u32 2102212464, %v90
    %v100 = vor.u32 %v98, %v99
    %v101 = vshll.u32 2102212464, %v89
    %v102 = vshrl.u32 920167782, %v90
    %v103 = vor.u32 %v101, %v102
    %v104 = vshll.u32 920167782, %v89
    %v105 = vshrl.u32 1326507024, %v90
    %v106 = vor.u32 %v104, %v105
    %vm107 = vcmp.lt.s32.totalorder %v88, 1
    %vm108 = vcmp.lt.s32.totalorder %v88, 2
    %vm109 = vcmp.lt.s32.totalorder %v88, 3
    %vm110 = vcmp.lt.s32.totalorder %v88, 4
    %v111 = vsel %vm107, %v91, %v94
    %v112 = vsel %vm110, %v100, 2102212464
    %v113 = vsel %vm109, %v97, %v112
    %v114 = vsel %vm108, %v111, %v113
    %v115 = vsel %vm107, %v94, %v97
    %v116 = vsel %vm110, %v103, 920167782
    %v117 = vsel %vm109, %v100, %v116
    %v118 = vsel %vm108, %v115, %v117
    %v119 = vsel %vm107, %v97, %v100
    %v120 = vsel %vm110, %v106, 1326507024
    %v121 = vsel %vm109, %v103, %v120
    %v122 = vsel %vm108, %v119, %v121
    %v123 = vshll.u32 %v83, 8
    %v124 = vmul.u32.u64.compose %v123, %v122
    %v125 = vextract.low.u32 %v124
    %v126 = vextract.high.u32 %v124
    %v127 = vmul.u32.u64.compose %v123, %v118
    %v128 = vextract.low.u32 %v127
    %v129 = vextract.high.u32 %v127
    %v130 = vmul.u32 %v123, %v114
    %v131 = vadd.s32 %v126, %v128
    %vm132 = vc.u32 %v126, %v128
    %v133 = vadd.s32 %v129, 1
    %v134 = vsel %vm132, %v133, %v129
    %v135 = vadd.s32 %v130, %v134
    %v136 = vadd.s32 %v135, 536870912
    %v137 = vshrl.u32 %v136, 30
    %v138 = vshll.u32 %v137, 30
    %v139 = vsub.s32 %v135, %v138
    %vm140 = vcmp.lt.s32.totalorder %v139, 0
    %v141 = vsub.s32 0, %v139
    %v142 = vsel %vm140, %v141, %v139
    %v143 = vclz %v142
    %v144 = vsub.s32 %v143, 2
    %vm145 = vcmp.gt.s32.totalorder 0, %v144
    %v146 = vsel %vm145, 0, %v144
    %v147 = vsub.s32 32, %v146
    %v148 = vshll.u32 %v139, %v146
    %v149 = vshrl.u32 %v131, %v147
    %v150 = vor.u32 %v148, %v149
    %v151 = vsub.s32 4294967266, %v146
    %v152 = vadd.s32 %v151, 127
    %v153 = vshll.u32 %v152, 23
    %v154 = vor.u32 4788187, %v153
    %v155 = vand.u32 2147483647, %v154
    %v157 = vcvt.s32.f32 %v150
    %v158 = vmul.f32 %v157, %v155
    %v159 = vxor.u32 %v158, 2147483648
    %v160 = vsel %vm77, %v159, %v158
    %v161 = vsub.s32 4, %v137
    %v162 = vsel %vm77, %v161, %v137
    %v163 = vsel %vm76, %v73, %v160
    %v164 = vsel %vm76, 0, %v162
    %v165 = vcosq.f32.pop %v163
    %v166 = vsinq.f32.pop %v163
    %vm167 = vweird.f32 %v73
    %v168 = vand.u32 %v164, 3
    %vm169 = vcmp.lt.s32.totalorder %v168, 2
    %vm170 = vcmp.eq.s32.totalorder %v168, 0
    %v171 = vxor.u32 %v166, 2147483648
    %v172 = vsel %vm170, %v165, %v171
    %vm173 = vcmp.eq.s32.totalorder %v168, 2
    %v174 = vxor.u32 %v165, 2147483648
    %v175 = vsel %vm173, %v174, %v166
    %v176 = vsel %vm169, %v172, %v175
    %v177 = vsel %vm167, nan, %v176
    %v178 = vmul.f32 %v72, %v177
    %v179 = vmul.f32 %v178, 0.65465367
    %v180 = vadd.f32 %v179, 1.0
    %v181 = vmul.f32 %v74, %v180
    %182 = vst [vmem:[#allocation6] sm:$0xff] %v181
    %v183 = vld [vmem:[#allocation3 + $0x8] sm:$0xff]
    %v184 = vand.u32 2147483647, %v73
    %vm185 = vcmp.le.f32.partialorder %v184, 0.7853982
    %vm186 = vcmp.lt.s32.totalorder %v73, 0
    %v187 = vand.u32 %v73, 2139095040
    %v188 = vshrl.u32 %v187, 23
    %v189 = vsub.s32 %v188, 127
    %v190 = vand.u32 2147483647, %v73
    %v191 = vand.u32 %v190, 8388607
    %v192 = vor.u32 %v191, 8388608
    %v193 = vsub.s32 0, %v192
    %v194 = vadd.s32 %v189, 1
    %vm195 = vcmp.gt.s32.totalorder %v194, 0
    %v196 = vsel %vm195, %v194, 0
    %v197 = vshrl.u32 %v196, 5
    %v198 = vand.u32 %v196, 31
    %v199 = vsub.s32 32, %v198
    %v200 = vshrl.u32 683565275, %v199
    %v201 = vshll.u32 683565275, %v198
    %v202 = vshrl.u32 2475754826, %v199
    %v203 = vor.u32 %v201, %v202
    %v204 = vshll.u32 2475754826, %v198
    %v205 = vshrl.u32 2131351028, %v199
    %v206 = vor.u32 %v204, %v205
    %v207 = vshll.u32 2131351028, %v198
    %v208 = vshrl.u32 2102212464, %v199
    %v209 = vor.u32 %v207, %v208
    %v210 = vshll.u32 2102212464, %v198
    %v211 = vshrl.u32 920167782, %v199
    %v212 = vor.u32 %v210, %v211
    %v213 = vshll.u32 920167782, %v198
    %v214 = vshrl.u32 1326507024, %v199
    %v215 = vor.u32 %v213, %v214
    %vm216 = vcmp.lt.s32.totalorder %v197, 1
    %vm217 = vcmp.lt.s32.totalorder %v197, 2
    %vm218 = vcmp.lt.s32.totalorder %v197, 3
    %vm219 = vcmp.lt.s32.totalorder %v197, 4
    %v220 = vsel %vm216, %v200, %v203
    %v221 = vsel %vm219, %v209, 2102212464
    %v222 = vsel %vm218, %v206, %v221
    %v223 = vsel %vm217, %v220, %v222
    %v224 = vsel %vm216, %v203, %v206
    %v225 = vsel %vm219, %v212, 920167782
    %v226 = vsel %vm218, %v209, %v225
    %v227 = vsel %vm217, %v224, %v226
    %v228 = vsel %vm216, %v206, %v209
    %v229 = vsel %vm219, %v215, 1326507024
    %v230 = vsel %vm218, %v212, %v229
    %v231 = vsel %vm217, %v228, %v230
    %v232 = vshll.u32 %v192, 8
    %v233 = vmul.u32.u64.compose %v232, %v231
    %v234 = vextract.low.u32 %v233
    %v235 = vextract.high.u32 %v233
    %v236 = vmul.u32.u64.compose %v232, %v227
    %v237 = vextract.low.u32 %v236
    %v238 = vextract.high.u32 %v236
    %v239 = vmul.u32 %v232, %v223
    %v240 = vadd.s32 %v235, %v237
    %vm241 = vc.u32 %v235, %v237
    %v242 = vadd.s32 %v238, 1
    %v243 = vsel %vm241, %v242, %v238
    %v244 = vadd.s32 %v239, %v243
    %v245 = vadd.s32 %v244, 536870912
    %v246 = vshrl.u32 %v245, 30
    %v247 = vshll.u32 %v246, 30
    %v248 = vsub.s32 %v244, %v247
    %vm249 = vcmp.lt.s32.totalorder %v248, 0
    %v250 = vsub.s32 0, %v248
    %v251 = vsel %vm249, %v250, %v248
    %v252 = vclz %v251
    %v253 = vsub.s32 %v252, 2
    %vm254 = vcmp.gt.s32.totalorder 0, %v253
    %v255 = vsel %vm254, 0, %v253
    %v256 = vsub.s32 32, %v255
    %v257 = vshll.u32 %v248, %v255
    %v258 = vshrl.u32 %v240, %v256
    %v259 = vor.u32 %v257, %v258
    %v260 = vsub.s32 4294967266, %v255
    %v261 = vadd.s32 %v260, 127
    %v262 = vshll.u32 %v261, 23
    %v263 = vor.u32 4788187, %v262
    %v264 = vand.u32 2147483647, %v263
    %v266 = vcvt.s32.f32 %v259
    %v267 = vmul.f32 %v266, %v264
    %v268 = vxor.u32 %v267, 2147483648
    %v269 = vsel %vm186, %v268, %v267
    %v270 = vsub.s32 4, %v246
    %v271 = vsel %vm186, %v270, %v246
    %v272 = vsel %vm185, %v73, %v269
    %v273 = vsel %vm185, 0, %v271
    %v274 = vcosq.f32.pop %v272
    %v275 = vsinq.f32.pop %v272
    %vm276 = vweird.f32 %v73
    %v277 = vadd.s32 %v273, 3
    %v278 = vand.u32 %v277, 3
    %vm279 = vcmp.lt.s32.totalorder %v278, 2
    %vm280 = vcmp.eq.s32.totalorder %v278, 0
    %v281 = vxor.u32 %v275, 2147483648
    %v282 = vsel %vm280, %v274, %v281
    %vm283 = vcmp.eq.s32.totalorder %v278, 2
    %v284 = vxor.u32 %v274, 2147483648
    %v285 = vsel %vm283, %v284, %v275
    %v286 = vsel %vm279, %v282, %v285
    %v287 = vsel %vm276, nan, %v286
    %v288 = vmul.f32 %v72, %v287
    %v289 = vmul.f32 %v288, 0.65465367
    %v290 = vadd.f32 %v289, 1.0
    %v291 = vmul.f32 %v183, %v290
    %292 = vst [vmem:[#allocation6 + $0x8] sm:$0xff] %v291
    // Predicated region
    $region14: #{tpu_custom_call.1} parent=1 // pred_check
      _
    $region15: #{tpu_custom_call.1} parent=1 // pred_check_branch
      %294 = sbr.rel (0) target = $region17
    $region16: #{tpu_custom_call.1} parent=1 // pred_region
      %s296 = ssub.s32 256, 256
      %297 = vsyncadd [#allocation5], %s296
      %s298 = sshll.u32 [#allocation6], 4
      %s299 = int_to_ptr.vmem [resolvable:$true] %s298
      %304 = dma.vmem_to_hbm [thread:$0]  %s299, 256, %s2, [#allocation5], 128, 128, 8
    $region17: #{tpu_custom_call.1} parent=1 // pred_fallthru
      _
    // Predicated region
    $region18: #{tpu_custom_call.1} parent=1 // pred_check
      _
    $region19: #{tpu_custom_call.1} parent=1 // pred_check_branch
      %306 = sbr.rel (0) target = $region21
    $region20: #{tpu_custom_call.1} parent=1 // pred_region
      %307 = dma.done [#allocation5], 256
    $region21: #{tpu_custom_call.1} parent=1 // pred_fallthru
      _
    %308 = vsyncpa [#allocation4], 1
    %309 = vsyncpa [#allocation5], 1

</llo_original>
